<compile_context>
chip_gen: v6e
topology: v6e:2x2x1
jax: 0.10.0
libtpu: 0.0.40
codegen_flags: <defaults>
</compile_context>

<pallas_src>
import jax
import jax.numpy as jnp
from jax.experimental import pallas as pl
from jax.experimental.pallas import tpu as pltpu

_LANES = 128     # vreg lane width
_SUBLANES = 8    # vreg sublane granule


# ---------------------------------------------------------------------------
# Fast path: input_dim == 1 (module default).  Dense batch slab, pure VPU.
# ---------------------------------------------------------------------------
def _simplefc_d1_kernel(p_ref, x_ref, o_ref):
    # p_ref : SMEM (3H+1,) f32 = [w1(H) | b1(H) | w2(H) | b2]  (resident)
    # x_ref : (block_rows, 128) dense batch slab tile
    # o_ref : (block_rows, 128) dense output slab tile
    h_dim = (p_ref.shape[0] - 1) // 3
    x = x_ref[...].astype(jnp.float32)
    # out = b2 + sum_j w2_j * relu(w1_j * x + b1_j); every op is a full-vreg
    # VPU op with a scalar (SMEM) operand -- no broadcasts, no reductions.
    acc = jnp.maximum(x * p_ref[0] + p_ref[h_dim], 0.0) * p_ref[2 * h_dim]
    for j in range(1, h_dim):
        acc = acc + jnp.maximum(x * p_ref[j] + p_ref[h_dim + j], 0.0) * p_ref[2 * h_dim + j]
    o_ref[...] = (acc + p_ref[3 * h_dim]).astype(o_ref.dtype)


# ---------------------------------------------------------------------------
# General path: input_dim > 1.  Lane-dense batch, both contractions on MXU.
# ---------------------------------------------------------------------------
def _simplefc_mxu_kernel(w1t_ref, b1_ref, w2r_ref, b2_ref, xt_ref, o_ref):
    # w1t_ref: (H, D) VMEM-resident, f32
    # b1_ref : (H, 1) VMEM-resident, f32
    # w2r_ref: (1, H) VMEM-resident, f32
    # b2_ref : SMEM (1,) f32
    # xt_ref : (D, TB) input tile, batch on lanes
    # o_ref  : (1, TB) output row tile
    xt = xt_ref[...].astype(jnp.float32)
    h = jnp.maximum(
        jnp.dot(w1t_ref[...], xt, preferred_element_type=jnp.float32) + b1_ref[...],
        0.0)                                                        # (H, TB)
    out = jnp.dot(w2r_ref[...], h, preferred_element_type=jnp.float32) + b2_ref[0]
    o_ref[...] = out.astype(o_ref.dtype)                            # (1, TB)


def simplefc_forward(x, w1, b1, w2, b2, *, max_block_rows=512, max_block_cols=16384):
    """JAX/Pallas equivalent of SimpleFC.forward.

    x:  (*batch, D_in)
    w1: (D_in, H), b1: (H,)   -- first Linear  (x @ w1 + b1 convention)
    w2: (H, 1),    b2: (1,)   -- second Linear
    returns: (*batch, 1)
    """
    *batch_shape, d_in = x.shape
    h_dim = w1.shape[1]
    n = 1
    for s in batch_shape:
        n *= s

    cparams = pltpu.CompilerParams(
        dimension_semantics=("parallel",),
        vmem_limit_bytes=32 * 1024 * 1024,   # explicit: v5e scoped default is 16 MiB
    )

    if d_in == 1:
        # -------- dense-slab specialization --------------------------------
        flat = x.reshape(n)                      # layout-identical, no transpose
        n_pad = _LANES * pl.cdiv(n, _LANES)
        if n_pad != n:
            # Minimal pad to the 128-lane granule (demo: 1000 -> 1024).
            # Lane-aligned N takes the zero-copy reshape path (no extra HBM pass).
            flat = jnp.pad(flat, (0, n_pad - n))
        rows = n_pad // _LANES
        x_slab = flat.reshape(rows, _LANES)      # free reshape (row-major)

        if rows <= 2 * _SUBLANES:
            block_rows, grid_r = rows, 1         # tiny N: single full-extent block
        else:
            # >= 2 grid steps so the v7x megacore can split the batch across
            # both TensorCores; cap block at 512 rows (64K samples, ~0.5 MiB
            # of double-buffered VMEM -- fine on v7x's 64 MiB as well).
            block_rows = min(max_block_rows,
                             _SUBLANES * pl.cdiv(pl.cdiv(rows, 2), _SUBLANES))
            grid_r = pl.cdiv(rows, block_rows)

        # All parameters in one tiny SMEM-resident vector (single DMA).
        params = jnp.concatenate([
            w1.reshape(h_dim).astype(jnp.float32),
            b1.reshape(h_dim).astype(jnp.float32),
            w2.reshape(h_dim).astype(jnp.float32),
            b2.reshape(1).astype(jnp.float32),
        ])

        out2d = pl.pallas_call(
            _simplefc_d1_kernel,
            out_shape=jax.ShapeDtypeStruct((rows, _LANES), x.dtype),
            grid=(grid_r,),
            in_specs=[
                pl.BlockSpec(memory_space=pltpu.MemorySpace.SMEM),     # packed params
                pl.BlockSpec((block_rows, _LANES), lambda i: (i, 0)),  # x slab tile
            ],
            out_specs=pl.BlockSpec((block_rows, _LANES), lambda i: (i, 0)),
            compiler_params=cparams,
        )(params, x_slab)

        # Pad lanes / partial-block garbage is discarded by this slice.
        return out2d.reshape(-1)[:n].reshape(*batch_shape, 1)

    # -------- general path (d_in > 1): lane-dense batch + MXU --------------
    xm = x.reshape(n, d_in)
    if n <= 2 * _LANES:
        n_pad, block_n, grid_n = n, n, 1         # single full-extent block
    else:
        n_pad = _LANES * pl.cdiv(n, _LANES)
        block_n = min(max_block_cols,
                      _LANES * pl.cdiv(pl.cdiv(n_pad, 2), _LANES))
        grid_n = pl.cdiv(n_pad, block_n)
        if n_pad != n:
            xm = jnp.pad(xm, ((0, n_pad - n), (0, 0)))
    xt = xm.T                                    # (D, Npad): batch on lanes

    w1t = w1.T.astype(jnp.float32)               # (H, D)   VMEM-resident
    b1c = b1.reshape(h_dim, 1).astype(jnp.float32)
    w2r = w2.reshape(1, h_dim).astype(jnp.float32)
    b2s = b2.reshape(1).astype(jnp.float32)      # SMEM scalar

    out_row = pl.pallas_call(
        _simplefc_mxu_kernel,
        out_shape=jax.ShapeDtypeStruct((1, n_pad), x.dtype),
        grid=(grid_n,),
        in_specs=[
            pl.BlockSpec((h_dim, d_in), lambda i: (0, 0)),   # W1^T resident
            pl.BlockSpec((h_dim, 1), lambda i: (0, 0)),      # b1 resident
            pl.BlockSpec((1, h_dim), lambda i: (0, 0)),      # W2 row resident
            pl.BlockSpec(memory_space=pltpu.MemorySpace.SMEM),  # b2 scalar
            pl.BlockSpec((d_in, block_n), lambda i: (0, i)), # x tile (pipelined)
        ],
        out_specs=pl.BlockSpec((1, block_n), lambda i: (0, i)),
        compiler_params=cparams,
    )(w1t, b1c, w2r, b2s, xt)

    return out_row[0, :n].reshape(*batch_shape, 1)


if __name__ == "__main__":
    key = jax.random.PRNGKey(0)
    k1, k2, k3, k4, kx = jax.random.split(key, 5)

    # Module defaults: input_dim=1, hidden_dim=16; x mimics
    # np.random.random(1000) * 150 - 50, shaped (N, 1) for Linear(1, ...).
    input_dim, hidden_dim = 1, 16
    n = 1000

    bound1 = 1.0 / (input_dim ** 0.5)
    w1 = jax.random.uniform(k1, (input_dim, hidden_dim), jnp.float32, -bound1, bound1)
    b1 = jax.random.uniform(k2, (hidden_dim,), jnp.float32, -bound1, bound1)
    bound2 = 1.0 / (hidden_dim ** 0.5)
    w2 = jax.random.uniform(k3, (hidden_dim, 1), jnp.float32, -bound2, bound2)
    b2 = jax.random.uniform(k4, (1,), jnp.float32, -bound2, bound2)
    x = jax.random.uniform(kx, (n, input_dim), jnp.float32, minval=-50.0, maxval=100.0)

    fwd = jax.jit(simplefc_forward)

    # --- primary path: d_in == 1 dense-slab kernel (exact f32 VPU math) ----
    out = jax.block_until_ready(fwd(x, w1, b1, w2, b2))
    ref = jnp.maximum(x @ w1 + b1, 0.0) @ w2 + b2
    assert out.shape == (n, 1)
    assert jnp.allclose(out, ref, atol=1e-4, rtol=1e-5)

    # --- secondary path: d_in > 1 lane-dense + MXU kernel -------------------
    d2, h2, n2 = 10, 16, 300
    kk = jax.random.split(jax.random.PRNGKey(1), 5)
    w1b = jax.random.uniform(kk[0], (d2, h2), jnp.float32, -0.3, 0.3)
    b1b = jax.random.uniform(kk[1], (h2,), jnp.float32, -0.3, 0.3)
    w2b = jax.random.uniform(kk[2], (h2, 1), jnp.float32, -0.25, 0.25)
    b2b = jax.random.uniform(kk[3], (1,), jnp.float32, -0.25, 0.25)
    xb = jax.random.normal(kk[4], (n2, d2), jnp.float32)
    outb = jax.block_until_ready(fwd(xb, w1b, b1b, w2b, b2b))
    refb = jnp.maximum(xb @ w1b + b1b, 0.0) @ w2b + b2b
    assert outb.shape == (n2, 1)
    # Loose tolerance: the MXU may run reduced-precision (bf16) passes for
    # f32 operands at default precision.
    assert jnp.allclose(outb, refb, atol=5e-2, rtol=5e-2)

    print("KERNEL_OK")
</pallas_src>

<mosaic_0001>
module attributes {stable_mosaic.version = 11 : i64} {
  func.func @_simplefc_d1_kernel(%arg0: i32, %arg1: memref<49xf32, #tpu.memory_space<smem>>, %arg2: memref<8x128xf32, #tpu.memory_space<vmem>>, %arg3: memref<8x128xf32, #tpu.memory_space<vmem>>) attributes {dimension_semantics = [#tpu.dimension_semantics<parallel>], iteration_bounds = array<i64: 1>, scalar_prefetch = 0 : i64, scratch_operands = 0 : i64, tpu.core_type = #tpu.core_type<tc>, window_params = [{transform_indices = @transform_0, window_bounds = array<i64: 49>}, {transform_indices = @transform_1, window_bounds = array<i64: 8, 128>}, {transform_indices = @transform_2, window_bounds = array<i64: 8, 128>}]} {
    %c0 = arith.constant 0 : index
    %c0_0 = arith.constant 0 : index
    %0 = vector.load %arg2[%c0, %c0_0] : memref<8x128xf32, #tpu.memory_space<vmem>>, vector<8x128xf32>
    %c0_1 = arith.constant 0 : index
    %1 = memref.load %arg1[%c0_1] : memref<49xf32, #tpu.memory_space<smem>>
    %2 = vector.broadcast %1 : f32 to vector<8x128xf32>
    %3 = arith.mulf %0, %2 : vector<8x128xf32>
    %c16 = arith.constant 16 : index
    %4 = memref.load %arg1[%c16] : memref<49xf32, #tpu.memory_space<smem>>
    %5 = vector.broadcast %4 : f32 to vector<8x128xf32>
    %6 = arith.addf %3, %5 : vector<8x128xf32>
    %cst = arith.constant 0.000000e+00 : f32
    %7 = vector.broadcast %cst : f32 to vector<8x128xf32>
    %8 = arith.maximumf %6, %7 : vector<8x128xf32>
    %c32 = arith.constant 32 : index
    %9 = memref.load %arg1[%c32] : memref<49xf32, #tpu.memory_space<smem>>
    %10 = vector.broadcast %9 : f32 to vector<8x128xf32>
    %11 = arith.mulf %8, %10 : vector<8x128xf32>
    %c1 = arith.constant 1 : index
    %12 = memref.load %arg1[%c1] : memref<49xf32, #tpu.memory_space<smem>>
    %13 = vector.broadcast %12 : f32 to vector<8x128xf32>
    %14 = arith.mulf %0, %13 : vector<8x128xf32>
    %c17 = arith.constant 17 : index
    %15 = memref.load %arg1[%c17] : memref<49xf32, #tpu.memory_space<smem>>
    %16 = vector.broadcast %15 : f32 to vector<8x128xf32>
    %17 = arith.addf %14, %16 : vector<8x128xf32>
    %cst_2 = arith.constant 0.000000e+00 : f32
    %18 = vector.broadcast %cst_2 : f32 to vector<8x128xf32>
    %19 = arith.maximumf %17, %18 : vector<8x128xf32>
    %c33 = arith.constant 33 : index
    %20 = memref.load %arg1[%c33] : memref<49xf32, #tpu.memory_space<smem>>
    %21 = vector.broadcast %20 : f32 to vector<8x128xf32>
    %22 = arith.mulf %19, %21 : vector<8x128xf32>
    %23 = arith.addf %11, %22 : vector<8x128xf32>
    %c2 = arith.constant 2 : index
    %24 = memref.load %arg1[%c2] : memref<49xf32, #tpu.memory_space<smem>>
    %25 = vector.broadcast %24 : f32 to vector<8x128xf32>
    %26 = arith.mulf %0, %25 : vector<8x128xf32>
    %c18 = arith.constant 18 : index
    %27 = memref.load %arg1[%c18] : memref<49xf32, #tpu.memory_space<smem>>
    %28 = vector.broadcast %27 : f32 to vector<8x128xf32>
    %29 = arith.addf %26, %28 : vector<8x128xf32>
    %cst_3 = arith.constant 0.000000e+00 : f32
    %30 = vector.broadcast %cst_3 : f32 to vector<8x128xf32>
    %31 = arith.maximumf %29, %30 : vector<8x128xf32>
    %c34 = arith.constant 34 : index
    %32 = memref.load %arg1[%c34] : memref<49xf32, #tpu.memory_space<smem>>
    %33 = vector.broadcast %32 : f32 to vector<8x128xf32>
    %34 = arith.mulf %31, %33 : vector<8x128xf32>
    %35 = arith.addf %23, %34 : vector<8x128xf32>
    %c3 = arith.constant 3 : index
    %36 = memref.load %arg1[%c3] : memref<49xf32, #tpu.memory_space<smem>>
    %37 = vector.broadcast %36 : f32 to vector<8x128xf32>
    %38 = arith.mulf %0, %37 : vector<8x128xf32>
    %c19 = arith.constant 19 : index
    %39 = memref.load %arg1[%c19] : memref<49xf32, #tpu.memory_space<smem>>
    %40 = vector.broadcast %39 : f32 to vector<8x128xf32>
    %41 = arith.addf %38, %40 : vector<8x128xf32>
    %cst_4 = arith.constant 0.000000e+00 : f32
    %42 = vector.broadcast %cst_4 : f32 to vector<8x128xf32>
    %43 = arith.maximumf %41, %42 : vector<8x128xf32>
    %c35 = arith.constant 35 : index
    %44 = memref.load %arg1[%c35] : memref<49xf32, #tpu.memory_space<smem>>
    %45 = vector.broadcast %44 : f32 to vector<8x128xf32>
    %46 = arith.mulf %43, %45 : vector<8x128xf32>
    %47 = arith.addf %35, %46 : vector<8x128xf32>
    %c4 = arith.constant 4 : index
    %48 = memref.load %arg1[%c4] : memref<49xf32, #tpu.memory_space<smem>>
    %49 = vector.broadcast %48 : f32 to vector<8x128xf32>
    %50 = arith.mulf %0, %49 : vector<8x128xf32>
    %c20 = arith.constant 20 : index
    %51 = memref.load %arg1[%c20] : memref<49xf32, #tpu.memory_space<smem>>
    %52 = vector.broadcast %51 : f32 to vector<8x128xf32>
    %53 = arith.addf %50, %52 : vector<8x128xf32>
    %cst_5 = arith.constant 0.000000e+00 : f32
    %54 = vector.broadcast %cst_5 : f32 to vector<8x128xf32>
    %55 = arith.maximumf %53, %54 : vector<8x128xf32>
    %c36 = arith.constant 36 : index
    %56 = memref.load %arg1[%c36] : memref<49xf32, #tpu.memory_space<smem>>
    %57 = vector.broadcast %56 : f32 to vector<8x128xf32>
    %58 = arith.mulf %55, %57 : vector<8x128xf32>
    %59 = arith.addf %47, %58 : vector<8x128xf32>
    %c5 = arith.constant 5 : index
    %60 = memref.load %arg1[%c5] : memref<49xf32, #tpu.memory_space<smem>>
    %61 = vector.broadcast %60 : f32 to vector<8x128xf32>
    %62 = arith.mulf %0, %61 : vector<8x128xf32>
    %c21 = arith.constant 21 : index
    %63 = memref.load %arg1[%c21] : memref<49xf32, #tpu.memory_space<smem>>
    %64 = vector.broadcast %63 : f32 to vector<8x128xf32>
    %65 = arith.addf %62, %64 : vector<8x128xf32>
    %cst_6 = arith.constant 0.000000e+00 : f32
    %66 = vector.broadcast %cst_6 : f32 to vector<8x128xf32>
    %67 = arith.maximumf %65, %66 : vector<8x128xf32>
    %c37 = arith.constant 37 : index
    %68 = memref.load %arg1[%c37] : memref<49xf32, #tpu.memory_space<smem>>
    %69 = vector.broadcast %68 : f32 to vector<8x128xf32>
    %70 = arith.mulf %67, %69 : vector<8x128xf32>
    %71 = arith.addf %59, %70 : vector<8x128xf32>
    %c6 = arith.constant 6 : index
    %72 = memref.load %arg1[%c6] : memref<49xf32, #tpu.memory_space<smem>>
    %73 = vector.broadcast %72 : f32 to vector<8x128xf32>
    %74 = arith.mulf %0, %73 : vector<8x128xf32>
    %c22 = arith.constant 22 : index
    %75 = memref.load %arg1[%c22] : memref<49xf32, #tpu.memory_space<smem>>
    %76 = vector.broadcast %75 : f32 to vector<8x128xf32>
    %77 = arith.addf %74, %76 : vector<8x128xf32>
    %cst_7 = arith.constant 0.000000e+00 : f32
    %78 = vector.broadcast %cst_7 : f32 to vector<8x128xf32>
    %79 = arith.maximumf %77, %78 : vector<8x128xf32>
    %c38 = arith.constant 38 : index
    %80 = memref.load %arg1[%c38] : memref<49xf32, #tpu.memory_space<smem>>
    %81 = vector.broadcast %80 : f32 to vector<8x128xf32>
    %82 = arith.mulf %79, %81 : vector<8x128xf32>
    %83 = arith.addf %71, %82 : vector<8x128xf32>
    %c7 = arith.constant 7 : index
    %84 = memref.load %arg1[%c7] : memref<49xf32, #tpu.memory_space<smem>>
    %85 = vector.broadcast %84 : f32 to vector<8x128xf32>
    %86 = arith.mulf %0, %85 : vector<8x128xf32>
    %c23 = arith.constant 23 : index
    %87 = memref.load %arg1[%c23] : memref<49xf32, #tpu.memory_space<smem>>
    %88 = vector.broadcast %87 : f32 to vector<8x128xf32>
    %89 = arith.addf %86, %88 : vector<8x128xf32>
    %cst_8 = arith.constant 0.000000e+00 : f32
    %90 = vector.broadcast %cst_8 : f32 to vector<8x128xf32>
    %91 = arith.maximumf %89, %90 : vector<8x128xf32>
    %c39 = arith.constant 39 : index
    %92 = memref.load %arg1[%c39] : memref<49xf32, #tpu.memory_space<smem>>
    %93 = vector.broadcast %92 : f32 to vector<8x128xf32>
    %94 = arith.mulf %91, %93 : vector<8x128xf32>
    %95 = arith.addf %83, %94 : vector<8x128xf32>
    %c8 = arith.constant 8 : index
    %96 = memref.load %arg1[%c8] : memref<49xf32, #tpu.memory_space<smem>>
    %97 = vector.broadcast %96 : f32 to vector<8x128xf32>
    %98 = arith.mulf %0, %97 : vector<8x128xf32>
    %c24 = arith.constant 24 : index
    %99 = memref.load %arg1[%c24] : memref<49xf32, #tpu.memory_space<smem>>
    %100 = vector.broadcast %99 : f32 to vector<8x128xf32>
    %101 = arith.addf %98, %100 : vector<8x128xf32>
    %cst_9 = arith.constant 0.000000e+00 : f32
    %102 = vector.broadcast %cst_9 : f32 to vector<8x128xf32>
    %103 = arith.maximumf %101, %102 : vector<8x128xf32>
    %c40 = arith.constant 40 : index
    %104 = memref.load %arg1[%c40] : memref<49xf32, #tpu.memory_space<smem>>
    %105 = vector.broadcast %104 : f32 to vector<8x128xf32>
    %106 = arith.mulf %103, %105 : vector<8x128xf32>
    %107 = arith.addf %95, %106 : vector<8x128xf32>
    %c9 = arith.constant 9 : index
    %108 = memref.load %arg1[%c9] : memref<49xf32, #tpu.memory_space<smem>>
    %109 = vector.broadcast %108 : f32 to vector<8x128xf32>
    %110 = arith.mulf %0, %109 : vector<8x128xf32>
    %c25 = arith.constant 25 : index
    %111 = memref.load %arg1[%c25] : memref<49xf32, #tpu.memory_space<smem>>
    %112 = vector.broadcast %111 : f32 to vector<8x128xf32>
    %113 = arith.addf %110, %112 : vector<8x128xf32>
    %cst_10 = arith.constant 0.000000e+00 : f32
    %114 = vector.broadcast %cst_10 : f32 to vector<8x128xf32>
    %115 = arith.maximumf %113, %114 : vector<8x128xf32>
    %c41 = arith.constant 41 : index
    %116 = memref.load %arg1[%c41] : memref<49xf32, #tpu.memory_space<smem>>
    %117 = vector.broadcast %116 : f32 to vector<8x128xf32>
    %118 = arith.mulf %115, %117 : vector<8x128xf32>
    %119 = arith.addf %107, %118 : vector<8x128xf32>
    %c10 = arith.constant 10 : index
    %120 = memref.load %arg1[%c10] : memref<49xf32, #tpu.memory_space<smem>>
    %121 = vector.broadcast %120 : f32 to vector<8x128xf32>
    %122 = arith.mulf %0, %121 : vector<8x128xf32>
    %c26 = arith.constant 26 : index
    %123 = memref.load %arg1[%c26] : memref<49xf32, #tpu.memory_space<smem>>
    %124 = vector.broadcast %123 : f32 to vector<8x128xf32>
    %125 = arith.addf %122, %124 : vector<8x128xf32>
    %cst_11 = arith.constant 0.000000e+00 : f32
    %126 = vector.broadcast %cst_11 : f32 to vector<8x128xf32>
    %127 = arith.maximumf %125, %126 : vector<8x128xf32>
    %c42 = arith.constant 42 : index
    %128 = memref.load %arg1[%c42] : memref<49xf32, #tpu.memory_space<smem>>
    %129 = vector.broadcast %128 : f32 to vector<8x128xf32>
    %130 = arith.mulf %127, %129 : vector<8x128xf32>
    %131 = arith.addf %119, %130 : vector<8x128xf32>
    %c11 = arith.constant 11 : index
    %132 = memref.load %arg1[%c11] : memref<49xf32, #tpu.memory_space<smem>>
    %133 = vector.broadcast %132 : f32 to vector<8x128xf32>
    %134 = arith.mulf %0, %133 : vector<8x128xf32>
    %c27 = arith.constant 27 : index
    %135 = memref.load %arg1[%c27] : memref<49xf32, #tpu.memory_space<smem>>
    %136 = vector.broadcast %135 : f32 to vector<8x128xf32>
    %137 = arith.addf %134, %136 : vector<8x128xf32>
    %cst_12 = arith.constant 0.000000e+00 : f32
    %138 = vector.broadcast %cst_12 : f32 to vector<8x128xf32>
    %139 = arith.maximumf %137, %138 : vector<8x128xf32>
    %c43 = arith.constant 43 : index
    %140 = memref.load %arg1[%c43] : memref<49xf32, #tpu.memory_space<smem>>
    %141 = vector.broadcast %140 : f32 to vector<8x128xf32>
    %142 = arith.mulf %139, %141 : vector<8x128xf32>
    %143 = arith.addf %131, %142 : vector<8x128xf32>
    %c12 = arith.constant 12 : index
    %144 = memref.load %arg1[%c12] : memref<49xf32, #tpu.memory_space<smem>>
    %145 = vector.broadcast %144 : f32 to vector<8x128xf32>
    %146 = arith.mulf %0, %145 : vector<8x128xf32>
    %c28 = arith.constant 28 : index
    %147 = memref.load %arg1[%c28] : memref<49xf32, #tpu.memory_space<smem>>
    %148 = vector.broadcast %147 : f32 to vector<8x128xf32>
    %149 = arith.addf %146, %148 : vector<8x128xf32>
    %cst_13 = arith.constant 0.000000e+00 : f32
    %150 = vector.broadcast %cst_13 : f32 to vector<8x128xf32>
    %151 = arith.maximumf %149, %150 : vector<8x128xf32>
    %c44 = arith.constant 44 : index
    %152 = memref.load %arg1[%c44] : memref<49xf32, #tpu.memory_space<smem>>
    %153 = vector.broadcast %152 : f32 to vector<8x128xf32>
    %154 = arith.mulf %151, %153 : vector<8x128xf32>
    %155 = arith.addf %143, %154 : vector<8x128xf32>
    %c13 = arith.constant 13 : index
    %156 = memref.load %arg1[%c13] : memref<49xf32, #tpu.memory_space<smem>>
    %157 = vector.broadcast %156 : f32 to vector<8x128xf32>
    %158 = arith.mulf %0, %157 : vector<8x128xf32>
    %c29 = arith.constant 29 : index
    %159 = memref.load %arg1[%c29] : memref<49xf32, #tpu.memory_space<smem>>
    %160 = vector.broadcast %159 : f32 to vector<8x128xf32>
    %161 = arith.addf %158, %160 : vector<8x128xf32>
    %cst_14 = arith.constant 0.000000e+00 : f32
    %162 = vector.broadcast %cst_14 : f32 to vector<8x128xf32>
    %163 = arith.maximumf %161, %162 : vector<8x128xf32>
    %c45 = arith.constant 45 : index
    %164 = memref.load %arg1[%c45] : memref<49xf32, #tpu.memory_space<smem>>
    %165 = vector.broadcast %164 : f32 to vector<8x128xf32>
    %166 = arith.mulf %163, %165 : vector<8x128xf32>
    %167 = arith.addf %155, %166 : vector<8x128xf32>
    %c14 = arith.constant 14 : index
    %168 = memref.load %arg1[%c14] : memref<49xf32, #tpu.memory_space<smem>>
    %169 = vector.broadcast %168 : f32 to vector<8x128xf32>
    %170 = arith.mulf %0, %169 : vector<8x128xf32>
    %c30 = arith.constant 30 : index
    %171 = memref.load %arg1[%c30] : memref<49xf32, #tpu.memory_space<smem>>
    %172 = vector.broadcast %171 : f32 to vector<8x128xf32>
    %173 = arith.addf %170, %172 : vector<8x128xf32>
    %cst_15 = arith.constant 0.000000e+00 : f32
    %174 = vector.broadcast %cst_15 : f32 to vector<8x128xf32>
    %175 = arith.maximumf %173, %174 : vector<8x128xf32>
    %c46 = arith.constant 46 : index
    %176 = memref.load %arg1[%c46] : memref<49xf32, #tpu.memory_space<smem>>
    %177 = vector.broadcast %176 : f32 to vector<8x128xf32>
    %178 = arith.mulf %175, %177 : vector<8x128xf32>
    %179 = arith.addf %167, %178 : vector<8x128xf32>
    %c15 = arith.constant 15 : index
    %180 = memref.load %arg1[%c15] : memref<49xf32, #tpu.memory_space<smem>>
    %181 = vector.broadcast %180 : f32 to vector<8x128xf32>
    %182 = arith.mulf %0, %181 : vector<8x128xf32>
    %c31 = arith.constant 31 : index
    %183 = memref.load %arg1[%c31] : memref<49xf32, #tpu.memory_space<smem>>
    %184 = vector.broadcast %183 : f32 to vector<8x128xf32>
    %185 = arith.addf %182, %184 : vector<8x128xf32>
    %cst_16 = arith.constant 0.000000e+00 : f32
    %186 = vector.broadcast %cst_16 : f32 to vector<8x128xf32>
    %187 = arith.maximumf %185, %186 : vector<8x128xf32>
    %c47 = arith.constant 47 : index
    %188 = memref.load %arg1[%c47] : memref<49xf32, #tpu.memory_space<smem>>
    %189 = vector.broadcast %188 : f32 to vector<8x128xf32>
    %190 = arith.mulf %187, %189 : vector<8x128xf32>
    %191 = arith.addf %179, %190 : vector<8x128xf32>
    %c48 = arith.constant 48 : index
    %192 = memref.load %arg1[%c48] : memref<49xf32, #tpu.memory_space<smem>>
    %193 = vector.broadcast %192 : f32 to vector<8x128xf32>
    %194 = arith.addf %191, %193 : vector<8x128xf32>
    %c0_17 = arith.constant 0 : index
    %c0_18 = arith.constant 0 : index
    %195 = vector.load %arg3[%c0_17, %c0_18] : memref<8x128xf32, #tpu.memory_space<vmem>>, vector<8x128xf32>
    tpu.vector_store %arg3[%c0_17, %c0_18], %194 {strides = array<i32>} : memref<8x128xf32, #tpu.memory_space<vmem>>, vector<8x128xf32>,
    return
  }
  func.func @transform_0(%arg0: i32) -> i32 {
    %c0_i32 = arith.constant 0 : i32
    %c0_i32_0 = arith.constant 0 : i32
    return %c0_i32 : i32
  }
  func.func @transform_1(%arg0: i32) -> (i32, i32) {
    %c0_i32 = arith.constant 0 : i32
    %c0_i32_0 = arith.constant 0 : i32
    return %arg0, %c0_i32 : i32, i32
  }
  func.func @transform_2(%arg0: i32) -> (i32, i32) {
    %c0_i32 = arith.constant 0 : i32
    %c0_i32_0 = arith.constant 0 : i32
    return %arg0, %c0_i32 : i32, i32
  }
}

</mosaic_0001>

<llo_original>
// kernel: simplefc_forward.1
$region0: #{simplefc_forward.1}
  #allocation0 [shape = 'u32[]', space=smem, size = 0x4, offset = 0x4, fixed_abs, tag = 'smem constant byte address 0x4 - core index']
  #allocation1 [shape = 'u32[144,128]{1,0:T(1,128)}', space=vmem, size = 0x12000, scoped, tag = 'internal scratch']
  %s0 = inlined_call_operand.vmem [shape: f32[49], index: 0, kind: input, shape index: {}]
  %s1 = inlined_call_operand.vmem [shape: f32[8,128], index: 1, kind: input, shape index: {}]
  %s2 = inlined_call_operand.hbm [shape: f32[8,128], index: 2, kind: output, shape index: {}]
  %s3 = sld [smem:[#allocation0]]
  $region22: #{simplefc_forward.1} parent=0
    _
  %s5 = ssub.s32 1, %s3
  %s6 = scalar_select 0, %s5, %s3
  $region1: #{simplefc_forward.1} parent=0
    #allocation2 [shape = 'u8[512]{0}', space=smem, size = 0x200, scoped, tag = 'input window, operand 0, single buffered']
    #allocation3 [shape = 's32[1]{0}', space=sflag, size = 0x4, scoped, tag = 'scoped memory for simplefc_forward.1']
    #allocation4 [shape = 's32[1]{0}', space=sflag, size = 0x4, scoped, tag = 'scoped memory for simplefc_forward.1']
    #allocation5 [shape = 'u8[4096]{0}', space=vmem, size = 0x1000, scoped, tag = 'output window, operand 0, single buffered']
    %7 = vsyncpa [#allocation4], 0
    %8 = vsyncpa [#allocation3], 0
    // Predicated region
    $region2: #{simplefc_forward.1} parent=1 // pred_check
      _
    $region3: #{simplefc_forward.1} parent=1 // pred_check_branch
      %10 = sbr.rel (0) target = $region5
    $region4: #{simplefc_forward.1} parent=1 // pred_region
      %s12 = ssub.s32 16, 16
      %13 = vsyncadd [#allocation4], %s12
      %s15 = sshll.u32 %s0, 4
      %s16 = int_to_ptr.vmem [resolvable:$true] %s15
      %18 = dma.vmem_to_smem %s16, 16, [#allocation2], [#allocation4]
    $region5: #{simplefc_forward.1} parent=1 // pred_fallthru
      _
    // Predicated region
    $region6: #{simplefc_forward.1} parent=1 // pred_check
      _
    $region7: #{simplefc_forward.1} parent=1 // pred_check_branch
      %20 = sbr.rel (0) target = $region9
    $region8: #{simplefc_forward.1} parent=1 // pred_region
      _
    $region9: #{simplefc_forward.1} parent=1 // pred_fallthru
      _
    // Predicated region
    $region10: #{simplefc_forward.1} parent=1 // pred_check
      _
    $region11: #{simplefc_forward.1} parent=1 // pred_check_branch
      %22 = sbr.rel (0) target = $region13
    $region12: #{simplefc_forward.1} parent=1 // pred_region
      %23 = dma.done [#allocation4], 16
    $region13: #{simplefc_forward.1} parent=1 // pred_fallthru
      _
    %24 = sfence
    %v25 = vld [vmem:[%s1] sm:$0xff]
    %s26 = sld [smem:[#allocation2]]
    %v27 = vstv %s26
    %v28 = vmul.f32 %v25, %v27
    %s29 = sld [smem:[#allocation2 + $0x10]]
    %v30 = vstv %s29
    %v31 = vadd.f32 %v28, %v30
    %v32 = vmax.f32 %v31, 0.0
    %s33 = sld [smem:[#allocation2 + $0x20]]
    %v34 = vstv %s33
    %v35 = vmul.f32 %v32, %v34
    %s36 = sld [smem:[#allocation2 + $0x1]]
    %v37 = vstv %s36
    %v38 = vmul.f32 %v25, %v37
    %s39 = sld [smem:[#allocation2 + $0x11]]
    %v40 = vstv %s39
    %v41 = vadd.f32 %v38, %v40
    %v42 = vmax.f32 %v41, 0.0
    %s43 = sld [smem:[#allocation2 + $0x21]]
    %v44 = vstv %s43
    %v45 = vmul.f32 %v42, %v44
    %v46 = vadd.f32 %v35, %v45
    %s47 = sld [smem:[#allocation2 + $0x2]]
    %v48 = vstv %s47
    %v49 = vmul.f32 %v25, %v48
    %s50 = sld [smem:[#allocation2 + $0x12]]
    %v51 = vstv %s50
    %v52 = vadd.f32 %v49, %v51
    %v53 = vmax.f32 %v52, 0.0
    %s54 = sld [smem:[#allocation2 + $0x22]]
    %v55 = vstv %s54
    %v56 = vmul.f32 %v53, %v55
    %v57 = vadd.f32 %v46, %v56
    %s58 = sld [smem:[#allocation2 + $0x3]]
    %v59 = vstv %s58
    %v60 = vmul.f32 %v25, %v59
    %s61 = sld [smem:[#allocation2 + $0x13]]
    %v62 = vstv %s61
    %v63 = vadd.f32 %v60, %v62
    %v64 = vmax.f32 %v63, 0.0
    %s65 = sld [smem:[#allocation2 + $0x23]]
    %v66 = vstv %s65
    %v67 = vmul.f32 %v64, %v66
    %v68 = vadd.f32 %v57, %v67
    %s69 = sld [smem:[#allocation2 + $0x4]]
    %v70 = vstv %s69
    %v71 = vmul.f32 %v25, %v70
    %s72 = sld [smem:[#allocation2 + $0x14]]
    %v73 = vstv %s72
    %v74 = vadd.f32 %v71, %v73
    %v75 = vmax.f32 %v74, 0.0
    %s76 = sld [smem:[#allocation2 + $0x24]]
    %v77 = vstv %s76
    %v78 = vmul.f32 %v75, %v77
    %v79 = vadd.f32 %v68, %v78
    %s80 = sld [smem:[#allocation2 + $0x5]]
    %v81 = vstv %s80
    %v82 = vmul.f32 %v25, %v81
    %s83 = sld [smem:[#allocation2 + $0x15]]
    %v84 = vstv %s83
    %v85 = vadd.f32 %v82, %v84
    %v86 = vmax.f32 %v85, 0.0
    %s87 = sld [smem:[#allocation2 + $0x25]]
    %v88 = vstv %s87
    %v89 = vmul.f32 %v86, %v88
    %v90 = vadd.f32 %v79, %v89
    %s91 = sld [smem:[#allocation2 + $0x6]]
    %v92 = vstv %s91
    %v93 = vmul.f32 %v25, %v92
    %s94 = sld [smem:[#allocation2 + $0x16]]
    %v95 = vstv %s94
    %v96 = vadd.f32 %v93, %v95
    %v97 = vmax.f32 %v96, 0.0
    %s98 = sld [smem:[#allocation2 + $0x26]]
    %v99 = vstv %s98
    %v100 = vmul.f32 %v97, %v99
    %v101 = vadd.f32 %v90, %v100
    %s102 = sld [smem:[#allocation2 + $0x7]]
    %v103 = vstv %s102
    %v104 = vmul.f32 %v25, %v103
    %s105 = sld [smem:[#allocation2 + $0x17]]
    %v106 = vstv %s105
    %v107 = vadd.f32 %v104, %v106
    %v108 = vmax.f32 %v107, 0.0
    %s109 = sld [smem:[#allocation2 + $0x27]]
    %v110 = vstv %s109
    %v111 = vmul.f32 %v108, %v110
    %v112 = vadd.f32 %v101, %v111
    %s113 = sld [smem:[#allocation2 + $0x8]]
    %v114 = vstv %s113
    %v115 = vmul.f32 %v25, %v114
    %s116 = sld [smem:[#allocation2 + $0x18]]
    %v117 = vstv %s116
    %v118 = vadd.f32 %v115, %v117
    %v119 = vmax.f32 %v118, 0.0
    %s120 = sld [smem:[#allocation2 + $0x28]]
    %v121 = vstv %s120
    %v122 = vmul.f32 %v119, %v121
    %v123 = vadd.f32 %v112, %v122
    %s124 = sld [smem:[#allocation2 + $0x9]]
    %v125 = vstv %s124
    %v126 = vmul.f32 %v25, %v125
    %s127 = sld [smem:[#allocation2 + $0x19]]
    %v128 = vstv %s127
    %v129 = vadd.f32 %v126, %v128
    %v130 = vmax.f32 %v129, 0.0
    %s131 = sld [smem:[#allocation2 + $0x29]]
    %v132 = vstv %s131
    %v133 = vmul.f32 %v130, %v132
    %v134 = vadd.f32 %v123, %v133
    %s135 = sld [smem:[#allocation2 + $0xa]]
    %v136 = vstv %s135
    %v137 = vmul.f32 %v25, %v136
    %s138 = sld [smem:[#allocation2 + $0x1a]]
    %v139 = vstv %s138
    %v140 = vadd.f32 %v137, %v139
    %v141 = vmax.f32 %v140, 0.0
    %s142 = sld [smem:[#allocation2 + $0x2a]]
    %v143 = vstv %s142
    %v144 = vmul.f32 %v141, %v143
    %v145 = vadd.f32 %v134, %v144
    %s146 = sld [smem:[#allocation2 + $0xb]]
    %v147 = vstv %s146
    %v148 = vmul.f32 %v25, %v147
    %s149 = sld [smem:[#allocation2 + $0x1b]]
    %v150 = vstv %s149
    %v151 = vadd.f32 %v148, %v150
    %v152 = vmax.f32 %v151, 0.0
    %s153 = sld [smem:[#allocation2 + $0x2b]]
    %v154 = vstv %s153
    %v155 = vmul.f32 %v152, %v154
    %v156 = vadd.f32 %v145, %v155
    %s157 = sld [smem:[#allocation2 + $0xc]]
    %v158 = vstv %s157
    %v159 = vmul.f32 %v25, %v158
    %s160 = sld [smem:[#allocation2 + $0x1c]]
    %v161 = vstv %s160
    %v162 = vadd.f32 %v159, %v161
    %v163 = vmax.f32 %v162, 0.0
    %s164 = sld [smem:[#allocation2 + $0x2c]]
    %v165 = vstv %s164
    %v166 = vmul.f32 %v163, %v165
    %v167 = vadd.f32 %v156, %v166
    %s168 = sld [smem:[#allocation2 + $0xd]]
    %v169 = vstv %s168
    %v170 = vmul.f32 %v25, %v169
    %s171 = sld [smem:[#allocation2 + $0x1d]]
    %v172 = vstv %s171
    %v173 = vadd.f32 %v170, %v172
    %v174 = vmax.f32 %v173, 0.0
    %s175 = sld [smem:[#allocation2 + $0x2d]]
    %v176 = vstv %s175
    %v177 = vmul.f32 %v174, %v176
    %v178 = vadd.f32 %v167, %v177
    %s179 = sld [smem:[#allocation2 + $0xe]]
    %v180 = vstv %s179
    %v181 = vmul.f32 %v25, %v180
    %s182 = sld [smem:[#allocation2 + $0x1e]]
    %v183 = vstv %s182
    %v184 = vadd.f32 %v181, %v183
    %v185 = vmax.f32 %v184, 0.0
    %s186 = sld [smem:[#allocation2 + $0x2e]]
    %v187 = vstv %s186
    %v188 = vmul.f32 %v185, %v187
    %v189 = vadd.f32 %v178, %v188
    %s190 = sld [smem:[#allocation2 + $0xf]]
    %v191 = vstv %s190
    %v192 = vmul.f32 %v25, %v191
    %s193 = sld [smem:[#allocation2 + $0x1f]]
    %v194 = vstv %s193
    %v195 = vadd.f32 %v192, %v194
    %v196 = vmax.f32 %v195, 0.0
    %s197 = sld [smem:[#allocation2 + $0x2f]]
    %v198 = vstv %s197
    %v199 = vmul.f32 %v196, %v198
    %v200 = vadd.f32 %v189, %v199
    %s201 = sld [smem:[#allocation2 + $0x30]]
    %v202 = vstv %s201
    %v203 = vadd.f32 %v200, %v202
    %204 = vst [vmem:[#allocation5] sm:$0xff] %v203
    // Predicated region
    $region14: #{simplefc_forward.1} parent=1 // pred_check
      _
    $region15: #{simplefc_forward.1} parent=1 // pred_check_branch
      %206 = sbr.rel (0) target = $region17
    $region16: #{simplefc_forward.1} parent=1 // pred_region
      %s208 = ssub.s32 128, 128
      %209 = vsyncadd [#allocation3], %s208
      %s211 = sshll.u32 [#allocation5], 4
      %s212 = int_to_ptr.vmem [resolvable:$true] %s211
      %214 = dma.vmem_to_hbm [thread:$0]  %s212, 128, %s2, [#allocation3]
    $region17: #{simplefc_forward.1} parent=1 // pred_fallthru
      _
    // Predicated region
    $region18: #{simplefc_forward.1} parent=1 // pred_check
      _
    $region19: #{simplefc_forward.1} parent=1 // pred_check_branch
      %216 = sbr.rel (0) target = $region21
    $region20: #{simplefc_forward.1} parent=1 // pred_region
      %217 = dma.done [#allocation3], 128
    $region21: #{simplefc_forward.1} parent=1 // pred_fallthru
      _
    %218 = vsyncpa [#allocation3], 1
    %219 = vsyncpa [#allocation4], 1

</llo_original>
